<compile_context>
chip_gen: v7x
topology: tpu7x:2x2x1
jax: 0.10.0
libtpu: 0.0.40
codegen_flags: <defaults>
</compile_context>

<pallas_src>
import functools
import re

import jax
import jax.numpy as jnp
from jax.experimental import pallas as pl
from jax.experimental.pallas import tpu as pltpu


# ---------------------------------------------------------------------------
# mish variants
# ---------------------------------------------------------------------------
def _mish_exact(x):
    # mish(x) = x * tanh(softplus(x)); branch-free safe softplus.
    sp = jnp.maximum(x, 0.0) + jnp.log1p(jnp.exp(-jnp.abs(x)))
    return x * jnp.tanh(sp)


def _mish_fast(x):
    """Single-transcendental mish for the kernel fast path.

    tanh(softplus(x)) = (t^2 + 2t) / (t^2 + 2t + 2) with t = exp(x).
    Evaluated with u = exp(-|x|) so nothing overflows:
      x >= 0:  (1 + 2u)   / (1 + 2u + 2u^2)
      x <  0:  (u^2 + 2u) / (u^2 + 2u + 2)
    One EUP exp + one approximate EUP reciprocal; the rest is VPU work.
    """
    dt = x.dtype
    u = jnp.exp(-jnp.abs(x))
    two_u = u + u
    u2 = u * u
    pos = x >= 0
    num = jnp.where(pos, 1.0 + two_u, u2 + two_u)
    den = jnp.where(pos, 1.0 + two_u + (u2 + u2), u2 + two_u + 2.0)
    inv = pl.reciprocal(den.astype(jnp.float32), approx=True)
    return (x * num * inv).astype(dt)


# ---------------------------------------------------------------------------
# kernel
# ---------------------------------------------------------------------------
def _mlp2pooler_kernel(x_ref, w1_ref, b1_ref, w2_ref, b2_ref, o_ref,
                       *, compute_dtype, act_dtype, exact_mish):
    rows, _ = x_ref.shape          # rows = block_b * S
    bt, d_out = o_ref.shape        # bt = block_b
    s = rows // bt
    mish = _mish_exact if exact_mish else _mish_fast

    # Layer 1: one tall matmul over all rows of this batch tile.
    x = x_ref[...].astype(compute_dtype)
    h = jnp.dot(x, w1_ref[...], preferred_element_type=jnp.float32)
    h = mish((h + b1_ref[...]).astype(act_dtype))             # (rows, H)

    # Layer 2.
    y = jnp.dot(h.astype(compute_dtype), w2_ref[...],
                preferred_element_type=jnp.float32)
    y = mish((y + b2_ref[...]).astype(act_dtype))             # (rows, D_out)

    # Max-pool over the sequence axis.  For S a multiple of 8 this reshape is
    # a free sublane re-grouping (no relayout copy); reduce is done in f32.
    y3 = y.astype(jnp.float32).reshape(bt, s, d_out)
    o_ref[...] = jnp.max(y3, axis=1).astype(o_ref.dtype)


# ---------------------------------------------------------------------------
# chip / VMEM helpers
# ---------------------------------------------------------------------------
def _tpu_generation():
    try:
        kind = jax.devices()[0].device_kind
    except Exception:
        return None
    m = re.search(r"v(\d+)", kind.lower())
    return int(m.group(1)) if m else None


def _vmem_capacity_bytes(tpu_gen):
    try:
        cap = int(pltpu.get_tpu_info().vmem_capacity_bytes)
        if cap > 0:
            return cap
    except Exception:
        pass
    # Fallback: 128 MiB/TC up to v6e, 64 MiB/TC on v7x or unknown.
    if tpu_gen is not None and tpu_gen <= 6:
        return 128 * 1024 * 1024
    return 64 * 1024 * 1024


def _padded_bytes(rows, cols, dtype):
    """Physical VMEM bytes of a (rows, cols) buffer after (sublane, 128-lane)
    layout padding (sublane multiple: 8 for 4-byte, 16 for 2-byte dtypes)."""
    itemsize = jnp.dtype(dtype).itemsize
    sub = max(8, 32 // itemsize)
    r = -(-rows // sub) * sub
    c = -(-cols // 128) * 128
    return r * c * itemsize


def _vmem_estimate(bb, seq, d_in, h, d_out, x_dtype, compute_dtype, act_dtype):
    rows = bb * seq
    est = 0
    est += 2 * _padded_bytes(rows, d_in, x_dtype)          # double-buffered x tile
    est += _padded_bytes(d_in, h, compute_dtype)           # w1 (single-buffered)
    est += _padded_bytes(h, d_out, compute_dtype)          # w2 (single-buffered)
    est += _padded_bytes(1, h, jnp.float32)                # b1
    est += _padded_bytes(1, d_out, jnp.float32)            # b2
    est += 2 * _padded_bytes(bb, d_out, jnp.float32)       # double-buffered out
    # live values in the kernel body
    est += _padded_bytes(rows, d_in, compute_dtype)        # x cast
    est += _padded_bytes(rows, h, jnp.float32)             # layer-1 f32 acc
    est += _padded_bytes(rows, h, act_dtype)               # h after mish
    est += _padded_bytes(rows, h, compute_dtype)           # h cast for matmul 2
    est += _padded_bytes(rows, d_out, jnp.float32)         # layer-2 f32 acc
    est += _padded_bytes(rows, d_out, act_dtype)           # y after mish
    return est


def _choose_block_b(batch, est_fn, vmem_budget, *, want_two_steps):
    """Largest batch tile fitting the VMEM budget.  Tiles are divisors of the
    batch and either the full batch or a multiple of 8 (output-block sublane
    constraint, which also keeps the flattened x block sublane-aligned)."""
    cands = [d for d in range(batch, 0, -1)
             if batch % d == 0 and (d == batch or d % 8 == 0)]
    if want_two_steps:
        halved = [d for d in cands if d <= batch // 2]
        if halved:
            cands = halved
    for d in cands:
        if est_fn(d) <= int(0.8 * vmem_budget):   # headroom for compiler scratch
            return d
    return cands[-1]


# ---------------------------------------------------------------------------
# pallas_call wrapper
# ---------------------------------------------------------------------------
def _mlp2pooler_call(x, w1c, b1f, w2c, b2f, *, compute_dtype, act_dtype,
                     exact_mish, block_b, tpu_gen):
    B, S, D_in = x.shape
    H = w1c.shape[1]
    D_out = w2c.shape[1]

    vmem_cap = _vmem_capacity_bytes(tpu_gen)
    vmem_budget = int(0.85 * vmem_cap)   # generation-aware cap with headroom

    est_fn = functools.partial(_vmem_estimate, seq=S, d_in=D_in, h=H,
                               d_out=D_out, x_dtype=x.dtype,
                               compute_dtype=compute_dtype,
                               act_dtype=act_dtype)
    if block_b is None:
        block_b = _choose_block_b(
            B, est_fn, vmem_budget,
            # v7x has 2 TensorCores: keep >= 2 grid steps so both get work.
            want_two_steps=(tpu_gen is not None and tpu_gen >= 7 and B >= 16))
    assert B % block_b == 0, (B, block_b)
    rows_per_step = block_b * S

    # Free HBM view: one contiguous 2D tile per step, lane/sublane-dense
    # (block_b, D_out) output blocks.  NOTE: feature dims < 128 leave vregs
    # lane-underoccupied; tune block_b at production feature sizes.
    x2d = x.reshape(B * S, D_in)

    grid = (B // block_b,)
    invariant = dict(pipeline_mode=pl.Buffered(1))   # grid-invariant operands

    out = pl.pallas_call(
        functools.partial(_mlp2pooler_kernel, compute_dtype=compute_dtype,
                          act_dtype=act_dtype, exact_mish=exact_mish),
        out_shape=jax.ShapeDtypeStruct((B, D_out), jnp.float32),
        grid_spec=pltpu.PrefetchScalarGridSpec(
            num_scalar_prefetch=0,
            grid=grid,
            in_specs=[
                pl.BlockSpec((rows_per_step, D_in), lambda i: (i, 0)),
                pl.BlockSpec((D_in, H), lambda i: (0, 0), **invariant),
                pl.BlockSpec((1, H), lambda i: (0, 0), **invariant),
                pl.BlockSpec((H, D_out), lambda i: (0, 0), **invariant),
                pl.BlockSpec((1, D_out), lambda i: (0, 0), **invariant),
            ],
            out_specs=pl.BlockSpec((block_b, D_out), lambda i: (i, 0)),
        ),
        compiler_params=pltpu.CompilerParams(
            dimension_semantics=("parallel",),
            vmem_limit_bytes=vmem_budget,
        ),
    )(x2d, w1c, b1f, w2c, b2f)

    # keepdim over the pooled (sequence) axis, matching max_pool2d((S, 1)).
    return out.reshape(B, 1, D_out)


def make_mlp2pooler(w1, b1, w2, b2, *, precise=False, block_b=None):
    """Build a jitted MLP2Pooler forward with parameter casts hoisted (once).

    precise=True : f32 MXU operands + exact mish (parity-validation path).
    precise=False: bf16 MXU operands, single-exp mish with approx reciprocal,
                   bf16 activation math on v6e/v7x (f32 elsewhere).
    """
    tpu_gen = _tpu_generation()
    if precise:
        compute_dtype = jnp.float32
        act_dtype = jnp.float32
        exact_mish = True
    else:
        compute_dtype = jnp.bfloat16
        act_dtype = (jnp.bfloat16 if (tpu_gen is not None and tpu_gen >= 6)
                     else jnp.float32)   # no bf16 VPU/EUP before v6e
        exact_mish = False

    # Hoisted, one-time parameter casts (not per call).
    w1c = jnp.asarray(w1, compute_dtype)
    w2c = jnp.asarray(w2, compute_dtype)
    b1f = jnp.asarray(b1, jnp.float32).reshape(1, -1)
    b2f = jnp.asarray(b2, jnp.float32).reshape(1, -1)

    @jax.jit
    def apply(x):
        return _mlp2pooler_call(x, w1c, b1f, w2c, b2f,
                                compute_dtype=compute_dtype,
                                act_dtype=act_dtype,
                                exact_mish=exact_mish,
                                block_b=block_b,
                                tpu_gen=tpu_gen)
    return apply


def mlp2pooler(x, w1, b1, w2, b2, *, precise=False, block_b=None):
    """One-shot convenience wrapper (prefer make_mlp2pooler for repeated calls)."""
    return make_mlp2pooler(w1, b1, w2, b2, precise=precise, block_b=block_b)(x)


# ---------------------------------------------------------------------------
# reference and test
# ---------------------------------------------------------------------------
def reference(x, w1, b1, w2, b2):
    hp = jax.lax.Precision.HIGHEST   # true-f32 matmuls for the baseline
    h = _mish_exact(jnp.einsum("bsd,dh->bsh", x, w1, precision=hp) + b1)
    y = _mish_exact(jnp.einsum("bsh,ho->bso", h, w2, precision=hp) + b2)
    return jnp.max(y, axis=-2, keepdims=True)


if __name__ == "__main__":
    # Small shapes consistent with the module's forward:
    # x: (batch, seq, in_features); intermediate_dim=64, output_dim=32.
    B, S, D_in = 2, 8, 32
    H, D_out = 64, 32

    key = jax.random.PRNGKey(0)
    kx, k1, k2, k3, k4 = jax.random.split(key, 5)

    x = jax.random.normal(kx, (B, S, D_in), dtype=jnp.float32)
    w1 = jax.random.normal(k1, (D_in, H), dtype=jnp.float32) * 0.1
    b1 = jax.random.normal(k2, (1, H), dtype=jnp.float32) * 0.1
    w2 = jax.random.normal(k3, (H, D_out), dtype=jnp.float32) * 0.1
    b2 = jax.random.normal(k4, (1, D_out), dtype=jnp.float32) * 0.1

    ref = reference(x, w1, b1, w2, b2)

    # Parity path: f32 MXU operands + exact mish.  Tolerance allows for the
    # backend's default f32-matmul precision behaviour.
    out_precise = jax.block_until_ready(
        make_mlp2pooler(w1, b1, w2, b2, precise=True)(x))
    assert out_precise.shape == (B, 1, D_out), out_precise.shape
    err_p = float(jnp.max(jnp.abs(out_precise - ref)))
    assert err_p < 2e-2, err_p

    # Fast path: bf16 MXU operands, single-exp mish + approx reciprocal,
    # bf16 activation math on v6e/v7x.
    out_fast = jax.block_until_ready(make_mlp2pooler(w1, b1, w2, b2)(x))
    assert out_fast.shape == (B, 1, D_out), out_fast.shape
    err_f = float(jnp.max(jnp.abs(out_fast - ref)))
    assert err_f < 5e-2, err_f

    print("KERNEL_OK")
</pallas_src>

<mosaic_0001>
module attributes {stable_mosaic.version = 11 : i64} {
  func.func @_mlp2pooler_kernel(%arg0: i32, %arg1: memref<16x32xf32, #tpu.memory_space<vmem>>, %arg2: memref<32x64xf32, #tpu.memory_space<vmem>>, %arg3: memref<1x64xf32, #tpu.memory_space<vmem>>, %arg4: memref<64x32xf32, #tpu.memory_space<vmem>>, %arg5: memref<1x32xf32, #tpu.memory_space<vmem>>, %arg6: memref<2x32xf32, #tpu.memory_space<vmem>>) attributes {dimension_semantics = [#tpu.dimension_semantics<parallel>], iteration_bounds = array<i64: 1>, scalar_prefetch = 0 : i64, scratch_operands = 0 : i64, tpu.core_type = #tpu.core_type<tc>, window_params = [{transform_indices = @transform_0, window_bounds = array<i64: 16, 32>}, {pipeline_mode = #tpu.pipeline_mode<synchronous>, transform_indices = @transform_1, window_bounds = array<i64: 32, 64>}, {pipeline_mode = #tpu.pipeline_mode<synchronous>, transform_indices = @transform_2, window_bounds = array<i64: 1, 64>}, {pipeline_mode = #tpu.pipeline_mode<synchronous>, transform_indices = @transform_3, window_bounds = array<i64: 64, 32>}, {pipeline_mode = #tpu.pipeline_mode<synchronous>, transform_indices = @transform_4, window_bounds = array<i64: 1, 32>}, {transform_indices = @transform_5, window_bounds = array<i64: 2, 32>}]} {
    %c0 = arith.constant 0 : index
    %c0_0 = arith.constant 0 : index
    %0 = vector.load %arg1[%c0, %c0_0] : memref<16x32xf32, #tpu.memory_space<vmem>>, vector<16x32xf32>
    %c0_1 = arith.constant 0 : index
    %c0_2 = arith.constant 0 : index
    %1 = vector.load %arg2[%c0_1, %c0_2] : memref<32x64xf32, #tpu.memory_space<vmem>>, vector<32x64xf32>
    %cst = arith.constant dense<0.000000e+00> : vector<16x64xf32>
    %2 = tpu.matmul %0, %1, %cst {dimension_numbers = #tpu.dot_dimension_numbers<[1], [0], [0], [1], [0, 0, 1, 1], [], []>} : vector<16x32xf32>, vector<32x64xf32>, vector<16x64xf32> -> vector<16x64xf32>
    %c0_3 = arith.constant 0 : index
    %c0_4 = arith.constant 0 : index
    %3 = vector.load %arg3[%c0_3, %c0_4] : memref<1x64xf32, #tpu.memory_space<vmem>>, vector<1x64xf32>
    %4 = vector.broadcast %3 : vector<1x64xf32> to vector<16x64xf32>
    %5 = arith.addf %2, %4 : vector<16x64xf32>
    %cst_5 = arith.constant 0.000000e+00 : f32
    %6 = vector.broadcast %cst_5 : f32 to vector<16x64xf32>
    %7 = arith.maximumf %5, %6 : vector<16x64xf32>
    %8 = math.absf %5 : vector<16x64xf32>
    %cst_6 = arith.constant 0.000000e+00 : f32
    %9 = vector.broadcast %cst_6 : f32 to vector<16x64xf32>
    %10 = arith.subf %9, %8 : vector<16x64xf32>
    %11 = math.exp %10 : vector<16x64xf32>
    %12 = math.log1p %11 : vector<16x64xf32>
    %13 = arith.addf %7, %12 : vector<16x64xf32>
    %14 = math.tanh %13 : vector<16x64xf32>
    %15 = arith.mulf %5, %14 : vector<16x64xf32>
    %c0_7 = arith.constant 0 : index
    %c0_8 = arith.constant 0 : index
    %16 = vector.load %arg4[%c0_7, %c0_8] : memref<64x32xf32, #tpu.memory_space<vmem>>, vector<64x32xf32>
    %cst_9 = arith.constant dense<0.000000e+00> : vector<16x32xf32>
    %17 = tpu.matmul %15, %16, %cst_9 {dimension_numbers = #tpu.dot_dimension_numbers<[1], [0], [0], [1], [0, 0, 1, 1], [], []>} : vector<16x64xf32>, vector<64x32xf32>, vector<16x32xf32> -> vector<16x32xf32>
    %c0_10 = arith.constant 0 : index
    %c0_11 = arith.constant 0 : index
    %18 = vector.load %arg5[%c0_10, %c0_11] : memref<1x32xf32, #tpu.memory_space<vmem>>, vector<1x32xf32>
    %19 = vector.broadcast %18 : vector<1x32xf32> to vector<16x32xf32>
    %20 = arith.addf %17, %19 : vector<16x32xf32>
    %cst_12 = arith.constant 0.000000e+00 : f32
    %21 = vector.broadcast %cst_12 : f32 to vector<16x32xf32>
    %22 = arith.maximumf %20, %21 : vector<16x32xf32>
    %23 = math.absf %20 : vector<16x32xf32>
    %cst_13 = arith.constant 0.000000e+00 : f32
    %24 = vector.broadcast %cst_13 : f32 to vector<16x32xf32>
    %25 = arith.subf %24, %23 : vector<16x32xf32>
    %26 = math.exp %25 : vector<16x32xf32>
    %27 = math.log1p %26 : vector<16x32xf32>
    %28 = arith.addf %22, %27 : vector<16x32xf32>
    %29 = math.tanh %28 : vector<16x32xf32>
    %30 = arith.mulf %20, %29 : vector<16x32xf32>
    %31 = vector.shape_cast %30 : vector<16x32xf32> to vector<2x8x32xf32>
    %cst_14 = arith.constant dense<0xFF800000> : vector<2x32xf32>
    %32 = vector.multi_reduction <maximumf>, %31, %cst_14 [1] : vector<2x8x32xf32> to vector<2x32xf32>
    %c0_15 = arith.constant 0 : index
    %c0_16 = arith.constant 0 : index
    %33 = vector.load %arg6[%c0_15, %c0_16] : memref<2x32xf32, #tpu.memory_space<vmem>>, vector<2x32xf32>
    tpu.vector_store %arg6[%c0_15, %c0_16], %32 {strides = array<i32>} : memref<2x32xf32, #tpu.memory_space<vmem>>, vector<2x32xf32>,
    return
  }
  func.func @transform_0(%arg0: i32) -> (i32, i32) {
    %c0_i32 = arith.constant 0 : i32
    %c0_i32_0 = arith.constant 0 : i32
    return %arg0, %c0_i32 : i32, i32
  }
  func.func @transform_1(%arg0: i32) -> (i32, i32) {
    %c0_i32 = arith.constant 0 : i32
    %c0_i32_0 = arith.constant 0 : i32
    %c0_i32_1 = arith.constant 0 : i32
    return %c0_i32, %c0_i32_0 : i32, i32
  }
  func.func @transform_2(%arg0: i32) -> (i32, i32) {
    %c0_i32 = arith.constant 0 : i32
    %c0_i32_0 = arith.constant 0 : i32
    %c0_i32_1 = arith.constant 0 : i32
    return %c0_i32, %c0_i32_0 : i32, i32
  }
  func.func @transform_3(%arg0: i32) -> (i32, i32) {
    %c0_i32 = arith.constant 0 : i32
    %c0_i32_0 = arith.constant 0 : i32
    %c0_i32_1 = arith.constant 0 : i32
    return %c0_i32, %c0_i32_0 : i32, i32
  }
  func.func @transform_4(%arg0: i32) -> (i32, i32) {
    %c0_i32 = arith.constant 0 : i32
    %c0_i32_0 = arith.constant 0 : i32
    %c0_i32_1 = arith.constant 0 : i32
    return %c0_i32, %c0_i32_0 : i32, i32
  }
  func.func @transform_5(%arg0: i32) -> (i32, i32) {
    %c0_i32 = arith.constant 0 : i32
    %c0_i32_0 = arith.constant 0 : i32
    return %arg0, %c0_i32 : i32, i32
  }
}

</mosaic_0001>

<llo_original>
// kernel: apply.1
$region0: #{apply.1}
  #allocation0 [shape = 'u32[]', space=smem, size = 0x4, offset = 0x4, fixed_abs, tag = 'smem constant byte address 0x4 - core index']
  #allocation1 [shape = 'u32[144,128]{1,0:T(1,128)}', space=vmem, size = 0x12000, scoped, tag = 'internal scratch']
  %s0 = inlined_call_operand.hbm [shape: f32[16,32], index: 0, kind: input, shape index: {}]
  %s1 = inlined_call_operand.hbm [shape: f32[32,64], index: 1, kind: input, shape index: {}]
  %s2 = inlined_call_operand.vmem [shape: f32[1,64], index: 2, kind: input, shape index: {}]
  %s3 = inlined_call_operand.hbm [shape: f32[64,32], index: 3, kind: input, shape index: {}]
  %s4 = inlined_call_operand.vmem [shape: f32[1,32], index: 4, kind: input, shape index: {}]
  %s5 = inlined_call_operand.hbm [shape: f32[2,32], index: 5, kind: output, shape index: {}]
  %s6 = sld [smem:[#allocation0]]
  $region42: #{apply.1} parent=0
    _
  %s8 = ssub.s32 1, %s6
  %s9 = scalar_select 0, %s8, %s6
  $region1: #{apply.1} parent=0
    #allocation2 [shape = 'u8[8192]{0}', space=vmem, size = 0x2000, scoped, tag = 'input window, operand 0, single buffered']
    #allocation3 [shape = 's32[1]{0}', space=sflag, size = 0x4, scoped, tag = 'scoped memory for apply.1']
    #allocation4 [shape = 's32[1]{0}', space=sflag, size = 0x4, scoped, tag = 'scoped memory for apply.1']
    #allocation5 [shape = 'u8[16384]{0}', space=vmem, size = 0x4000, scoped, tag = 'input window, operand 1, single buffered']
    #allocation6 [shape = 's32[1]{0}', space=sflag, size = 0x4, scoped, tag = 'scoped memory for apply.1']
    #allocation7 [shape = 'u8[32768]{0}', space=vmem, size = 0x8000, scoped, tag = 'input window, operand 3, single buffered']
    #allocation8 [shape = 'u8[1024]{0}', space=vmem, size = 0x400, scoped, tag = 'output window, operand 0, single buffered']
    %10 = vsyncpa [#allocation3], 0
    %11 = vsyncpa [#allocation6], 0
    %12 = vsyncpa [#allocation4], 0
    // Predicated region
    $region2: #{apply.1} parent=1 // pred_check
      _
    $region3: #{apply.1} parent=1 // pred_check_branch
      %14 = sbr.rel (0) target = $region5
    $region4: #{apply.1} parent=1 // pred_region
      %s16 = ssub.s32 256, 256
      %17 = vsyncadd [#allocation3], %s16
      %s18 = sshll.u32 [#allocation2], 4
      %s19 = int_to_ptr.vmem [resolvable:$true] %s18
      %24 = dma.hbm_to_vmem [thread:$0]  %s0, 256, %s19, [#allocation3], 128, 128, 8
    $region5: #{apply.1} parent=1 // pred_fallthru
      _
    // Predicated region
    $region6: #{apply.1} parent=1 // pred_check
      _
    $region7: #{apply.1} parent=1 // pred_check_branch
      %26 = sbr.rel (0) target = $region9
    $region8: #{apply.1} parent=1 // pred_region
      %s28 = ssub.s32 512, 512
      %29 = vsyncadd [#allocation6], %s28
      %s30 = sshll.u32 [#allocation5], 4
      %s31 = int_to_ptr.vmem [resolvable:$true] %s30
      %36 = dma.hbm_to_vmem [thread:$0]  %s1, 512, %s31, [#allocation6], 128, 128, 8
    $region9: #{apply.1} parent=1 // pred_fallthru
      _
    // Predicated region
    $region10: #{apply.1} parent=1 // pred_check
      _
    $region11: #{apply.1} parent=1 // pred_check_branch
      %38 = sbr.rel (0) target = $region13
    $region12: #{apply.1} parent=1 // pred_region
      _
    $region13: #{apply.1} parent=1 // pred_fallthru
      _
    // Predicated region
    $region14: #{apply.1} parent=1 // pred_check
      _
    $region15: #{apply.1} parent=1 // pred_check_branch
      %40 = sbr.rel (0) target = $region17
    $region16: #{apply.1} parent=1 // pred_region
      %s42 = ssub.s32 1024, 1024
      %43 = vsyncadd [#allocation6], %s42
      %s44 = sshll.u32 [#allocation7], 4
      %s45 = int_to_ptr.vmem [resolvable:$true] %s44
      %50 = dma.hbm_to_vmem [thread:$0]  %s3, 1024, %s45, [#allocation6], 128, 128, 8
    $region17: #{apply.1} parent=1 // pred_fallthru
      _
    // Predicated region
    $region18: #{apply.1} parent=1 // pred_check
      _
    $region19: #{apply.1} parent=1 // pred_check_branch
      %52 = sbr.rel (0) target = $region21
    $region20: #{apply.1} parent=1 // pred_region
      _
    $region21: #{apply.1} parent=1 // pred_fallthru
      _
    // Predicated region
    $region22: #{apply.1} parent=1 // pred_check
      _
    $region23: #{apply.1} parent=1 // pred_check_branch
      %54 = sbr.rel (0) target = $region25
    $region24: #{apply.1} parent=1 // pred_region
      %55 = dma.done [#allocation3], 256
    $region25: #{apply.1} parent=1 // pred_fallthru
      _
    // Predicated region
    $region26: #{apply.1} parent=1 // pred_check
      _
    $region27: #{apply.1} parent=1 // pred_check_branch
      %57 = sbr.rel (0) target = $region29
    $region28: #{apply.1} parent=1 // pred_region
      %58 = dma.done [#allocation6], 512
    $region29: #{apply.1} parent=1 // pred_fallthru
      _
    // Predicated region
    $region30: #{apply.1} parent=1 // pred_check
      _
    $region31: #{apply.1} parent=1 // pred_check_branch
      %60 = sbr.rel (0) target = $region33
    $region32: #{apply.1} parent=1 // pred_region
      %61 = dma.done [#allocation6], 1024
    $region33: #{apply.1} parent=1 // pred_fallthru
      _
    %v62 = vld [vmem:[#allocation2] sm:$0xff]
    %v63 = vld [vmem:[#allocation2 + $0x8] sm:$0xff]
    %v64 = vld [vmem:[#allocation5] sm:$0xff]
    %v65 = vld [vmem:[#allocation5 + $0x8] sm:$0xff]
    %v66 = vld [vmem:[#allocation5 + $0x10] sm:$0xff]
    %v67 = vld [vmem:[#allocation5 + $0x18] sm:$0xff]
    %v68 = vld [vmem:[%s2] sm:$0x1]
    %v70 = vlaneseq
    %v71 = vshrl.u32 %v70, 7
    %v72 = vsub.s32 0, %v71
    %v73 = vrot.slane %v68, %v72
    %vm75 = vcmask 261120
    %v77 = vsel %vm75, %v62, 0
    %v80 = vsel %vm75, %v63, 0
    %82 = vmatprep.subr.mxu0 0.0
    %83 = vmatpush1.msra.mxu0 %v64
    %84 = vmatprep.subr.mxu0 0.0
    %85 = vmatpush1.msra.mxu0 %v65
    %86 = vmatprep.subr.mxu0 0.0
    %87 = vmatpush1.msra.mxu0 %v66
    %88 = vmatprep.subr.mxu0 0.0
    %89 = vmatpush1.msra.mxu0 %v67
    %90 = vmatprep.subr.mxu0 0.0
    %91 = vmatpush1.msra.mxu0 0.0
    %92 = vmatprep.subr.mxu0 0.0
    %93 = vmatpush1.msra.mxu0 0.0
    %94 = vmatprep.subr.mxu0 0.0
    %95 = vmatpush1.msra.mxu0 0.0
    %96 = vmatprep.subr.mxu0 0.0
    %97 = vmatpush1.msra.mxu0 0.0
    %98 = vmatprep.subr.mxu0 0.0
    %99 = vmatpush1.msra.mxu0 0.0
    %100 = vmatprep.subr.mxu0 0.0
    %101 = vmatpush1.msra.mxu0 0.0
    %102 = vmatprep.subr.mxu0 0.0
    %103 = vmatpush1.msra.mxu0 0.0
    %104 = vmatprep.subr.mxu0 0.0
    %105 = vmatpush1.msra.mxu0 0.0
    %106 = vmatprep.subr.mxu0 0.0
    %107 = vmatpush1.msra.mxu0 0.0
    %108 = vmatprep.subr.mxu0 0.0
    %109 = vmatpush1.msra.mxu0 0.0
    %110 = vmatprep.subr.mxu0 0.0
    %111 = vmatpush1.msra.mxu0 0.0
    %112 = vmatprep.subr.mxu0 0.0
    %113 = vmatpush1.msra.mxu0 0.0
    %114 = vmatprep.subr.mxu0 0.0
    %115 = vmatpush1.msra.mxu0 0.0
    %116 = vmatprep.subr.mxu0 0.0
    %117 = vmatpush1.msra.mxu0 0.0
    %118 = vmatprep.subr.mxu0 0.0
    %119 = vmatpush1.msra.mxu0 0.0
    %120 = vmatprep.subr.mxu0 0.0
    %121 = vmatpush1.msra.mxu0 0.0
    %122 = vmatprep.subr.mxu0 0.0
    %123 = vmatpush1.msra.mxu0 0.0
    %124 = vmatprep.subr.mxu0 0.0
    %125 = vmatpush1.msra.mxu0 0.0
    %126 = vmatprep.subr.mxu0 0.0
    %127 = vmatpush1.msra.mxu0 0.0
    %128 = vmatprep.subr.mxu0 0.0
    %129 = vmatpush1.msra.mxu0 0.0
    %130 = vmatprep.subr.mxu0 0.0
    %131 = vmatpush1.msra.mxu0 0.0
    %132 = vmatprep.subr.mxu0 0.0
    %133 = vmatpush1.msra.mxu0 0.0
    %134 = vmatprep.subr.mxu0 0.0
    %135 = vmatpush1.msra.mxu0 0.0
    %136 = vmatprep.subr.mxu0 0.0
    %137 = vmatpush1.msra.mxu0 0.0
    %138 = vmatprep.subr.mxu0 0.0
    %139 = vmatpush1.msra.mxu0 0.0
    %140 = vmatprep.subr.mxu0 0.0
    %141 = vmatpush1.msra.mxu0 0.0
    %142 = vmatprep.subr.mxu0 0.0
    %143 = vmatpush1.msra.mxu0 0.0
    %144 = vmatprep.subr.mxu0 0.0
    %145 = vmatpush1.msra.mxu0 0.0
    %146 = vmatprep.mubr.f32.mxu0 0.0
    %147 = vmatmul.mubr.f32.gmra.mrb[0].mxu0 %v77
    %v148 = vpop.f32.mrb[0].mxu0
    %v149 = vadd.f32 %v73, %v148
    %v150 = vpop.f32.mrb[0].mxu0
    %151 = vmatprep.mubr.f32.mxu0 0.0
    %152 = vmatmul.mubr.f32.gmra.mrb[0].mxu0 %v80
    %v153 = vpop.f32.mrb[0].mxu0
    %v154 = vadd.f32 %v73, %v153
    %v155 = vpop.f32.mrb[0].mxu0
    %156 = vdwg.mxu0
    %v157 = vmax.f32 %v149, 0.0
    %v158 = vmax.f32 %v154, 0.0
    %v159 = vand.u32 2147483647, %v149
    %v160 = vand.u32 2147483647, %v154
    %v161 = vsub.f32 0.0, %v159
    %v162 = vsub.f32 0.0, %v160
    %v163 = vmul.f32 %v161, 1.442695
    %v164 = vpow.pop %v163
    %v165 = vmul.f32 %v162, 1.442695
    %v166 = vpow.pop %v165
    %v167 = vadd.f32 %v164, 1.0
    %v168 = vlog2.pop %v167
    %v169 = vmul.f32 %v168, 0.6931472
    %v170 = vmul.f32 -0.5, %v164
    %v171 = vadd.f32 %v170, 1.0
    %v172 = vmul.f32 %v171, %v164
    %v173 = vand.u32 2147483647, %v164
    %vm174 = vcmp.lt.f32.partialorder %v173, 0.0004427343
    %v175 = vsel %vm174, %v172, %v169
    %v176 = vadd.f32 %v166, 1.0
    %v177 = vlog2.pop %v176
    %v178 = vmul.f32 %v177, 0.6931472
    %v179 = vmul.f32 -0.5, %v166
    %v180 = vadd.f32 %v179, 1.0
    %v181 = vmul.f32 %v180, %v166
    %v182 = vand.u32 2147483647, %v166
    %vm183 = vcmp.lt.f32.partialorder %v182, 0.0004427343
    %v184 = vsel %vm183, %v181, %v178
    %v185 = vadd.f32 %v157, %v175
    %v186 = vadd.f32 %v158, %v184
    %v187 = vtanh.pop %v185
    %v188 = vtanh.pop %v186
    %v189 = vmul.f32 %v149, %v187
    %v190 = vmul.f32 %v154, %v188
    %v191 = vld [vmem:[#allocation7] sm:$0xff]
    %v192 = vld [vmem:[#allocation7 + $0x8] sm:$0xff]
    %v193 = vld [vmem:[#allocation7 + $0x10] sm:$0xff]
    %v194 = vld [vmem:[#allocation7 + $0x18] sm:$0xff]
    %v195 = vld [vmem:[#allocation7 + $0x20] sm:$0xff]
    %v196 = vld [vmem:[#allocation7 + $0x28] sm:$0xff]
    %v197 = vld [vmem:[#allocation7 + $0x30] sm:$0xff]
    %v198 = vld [vmem:[#allocation7 + $0x38] sm:$0xff]
    %v199 = vld [vmem:[%s4] sm:$0x1]
    %v201 = vlaneseq
    %v202 = vshrl.u32 %v201, 7
    %v203 = vsub.s32 0, %v202
    %v204 = vrot.slane %v199, %v203
    %vm206 = vcmask 523264
    %v208 = vsel %vm206, %v189, 0
    %v211 = vsel %vm206, %v190, 0
    %213 = vmatprep.subr.mxu0 0.0
    %214 = vmatpush1.msra.mxu0 %v191
    %215 = vmatprep.subr.mxu0 0.0
    %216 = vmatpush1.msra.mxu0 %v192
    %217 = vmatprep.subr.mxu0 0.0
    %218 = vmatpush1.msra.mxu0 %v193
    %219 = vmatprep.subr.mxu0 0.0
    %220 = vmatpush1.msra.mxu0 %v194
    %221 = vmatprep.subr.mxu0 0.0
    %222 = vmatpush1.msra.mxu0 %v195
    %223 = vmatprep.subr.mxu0 0.0
    %224 = vmatpush1.msra.mxu0 %v196
    %225 = vmatprep.subr.mxu0 0.0
    %226 = vmatpush1.msra.mxu0 %v197
    %227 = vmatprep.subr.mxu0 0.0
    %228 = vmatpush1.msra.mxu0 %v198
    %229 = vmatprep.subr.mxu0 0.0
    %230 = vmatpush1.msra.mxu0 0.0
    %231 = vmatprep.subr.mxu0 0.0
    %232 = vmatpush1.msra.mxu0 0.0
    %233 = vmatprep.subr.mxu0 0.0
    %234 = vmatpush1.msra.mxu0 0.0
    %235 = vmatprep.subr.mxu0 0.0
    %236 = vmatpush1.msra.mxu0 0.0
    %237 = vmatprep.subr.mxu0 0.0
    %238 = vmatpush1.msra.mxu0 0.0
    %239 = vmatprep.subr.mxu0 0.0
    %240 = vmatpush1.msra.mxu0 0.0
    %241 = vmatprep.subr.mxu0 0.0
    %242 = vmatpush1.msra.mxu0 0.0
    %243 = vmatprep.subr.mxu0 0.0
    %244 = vmatpush1.msra.mxu0 0.0
    %245 = vmatprep.subr.mxu0 0.0
    %246 = vmatpush1.msra.mxu0 0.0
    %247 = vmatprep.subr.mxu0 0.0
    %248 = vmatpush1.msra.mxu0 0.0
    %249 = vmatprep.subr.mxu0 0.0
    %250 = vmatpush1.msra.mxu0 0.0
    %251 = vmatprep.subr.mxu0 0.0
    %252 = vmatpush1.msra.mxu0 0.0
    %253 = vmatprep.subr.mxu0 0.0
    %254 = vmatpush1.msra.mxu0 0.0
    %255 = vmatprep.subr.mxu0 0.0
    %256 = vmatpush1.msra.mxu0 0.0
    %257 = vmatprep.subr.mxu0 0.0
    %258 = vmatpush1.msra.mxu0 0.0
    %259 = vmatprep.subr.mxu0 0.0
    %260 = vmatpush1.msra.mxu0 0.0
    %261 = vmatprep.subr.mxu0 0.0
    %262 = vmatpush1.msra.mxu0 0.0
    %263 = vmatprep.subr.mxu0 0.0
    %264 = vmatpush1.msra.mxu0 0.0
    %265 = vmatprep.subr.mxu0 0.0
    %266 = vmatpush1.msra.mxu0 0.0
    %267 = vmatprep.subr.mxu0 0.0
    %268 = vmatpush1.msra.mxu0 0.0
    %269 = vmatprep.subr.mxu0 0.0
    %270 = vmatpush1.msra.mxu0 0.0
    %271 = vmatprep.subr.mxu0 0.0
    %272 = vmatpush1.msra.mxu0 0.0
    %273 = vmatprep.subr.mxu0 0.0
    %274 = vmatpush1.msra.mxu0 0.0
    %275 = vmatprep.subr.mxu0 0.0
    %276 = vmatpush1.msra.mxu0 0.0
    %277 = vmatprep.mubr.f32.mxu0 0.0
    %278 = vmatmul.mubr.f32.gmra.mrb[0].mxu0 %v208
    %v279 = vpop.f32.mrb[0].mxu0
    %v280 = vadd.f32 %v204, %v279
    %v281 = vpop.f32.mrb[0].mxu0
    %282 = vmatprep.mubr.f32.mxu0 0.0
    %283 = vmatmul.mubr.f32.gmra.mrb[0].mxu0 %v211
    %v284 = vpop.f32.mrb[0].mxu0
    %v285 = vadd.f32 %v204, %v284
    %v286 = vpop.f32.mrb[0].mxu0
    %287 = vdwg.mxu0
    %v288 = vmax.f32 %v280, 0.0
    %v289 = vmax.f32 %v285, 0.0
    %v290 = vand.u32 2147483647, %v280
    %v291 = vand.u32 2147483647, %v285
    %v292 = vsub.f32 0.0, %v290
    %v293 = vsub.f32 0.0, %v291
    %v294 = vmul.f32 %v292, 1.442695
    %v295 = vpow.pop %v294
    %v296 = vmul.f32 %v293, 1.442695
    %v297 = vpow.pop %v296
    %v298 = vadd.f32 %v295, 1.0
    %v299 = vlog2.pop %v298
    %v300 = vmul.f32 %v299, 0.6931472
    %v301 = vmul.f32 -0.5, %v295
    %v302 = vadd.f32 %v301, 1.0
    %v303 = vmul.f32 %v302, %v295
    %v304 = vand.u32 2147483647, %v295
    %vm305 = vcmp.lt.f32.partialorder %v304, 0.0004427343
    %v306 = vsel %vm305, %v303, %v300
    %v307 = vadd.f32 %v297, 1.0
    %v308 = vlog2.pop %v307
    %v309 = vmul.f32 %v308, 0.6931472
    %v310 = vmul.f32 -0.5, %v297
    %v311 = vadd.f32 %v310, 1.0
    %v312 = vmul.f32 %v311, %v297
    %v313 = vand.u32 2147483647, %v297
    %vm314 = vcmp.lt.f32.partialorder %v313, 0.0004427343
    %v315 = vsel %vm314, %v312, %v309
    %v316 = vadd.f32 %v288, %v306
    %v317 = vadd.f32 %v289, %v315
    %v318 = vtanh.pop %v316
    %v319 = vtanh.pop %v317
    %v320 = vmul.f32 %v280, %v318
    %v321 = vmul.f32 %v285, %v319
    %v322 = vsel %vm75, %v320, -inf
    %v323 = vrot.slane %v322, 4
    %v324 = vmax.f32 %v322, %v323
    %v325 = vrot.slane %v324, 2
    %v326 = vmax.f32 %v324, %v325
    %v327 = vrot.slane %v326, 1
    %v328 = vmax.f32 %v326, %v327
    %v329 = vsel %vm75, %v321, -inf
    %v330 = vrot.slane %v329, 4
    %v331 = vmax.f32 %v329, %v330
    %v332 = vrot.slane %v331, 2
    %v333 = vmax.f32 %v331, %v332
    %v334 = vrot.slane %v333, 1
    %v335 = vmax.f32 %v333, %v334
    %vm338 = vcmask 1041409
    %v339 = vsel %vm338, %v335, %v328
    %vm341 = vcmask 254976
    %342 = vst.msk [vmem:[#allocation8] sm:$0x3] %vm341, %v339
    // Predicated region
    $region34: #{apply.1} parent=1 // pred_check
      _
    $region35: #{apply.1} parent=1 // pred_check_branch
      %344 = sbr.rel (0) target = $region37
    $region36: #{apply.1} parent=1 // pred_region
      %s346 = ssub.s32 32, 32
      %347 = vsyncadd [#allocation4], %s346
      %s349 = sshll.u32 [#allocation8], 4
      %s350 = int_to_ptr.vmem [resolvable:$true] %s349
      %352 = dma.vmem_to_hbm [thread:$0]  %s350, 32, %s5, [#allocation4]
    $region37: #{apply.1} parent=1 // pred_fallthru
      _
    // Predicated region
    $region38: #{apply.1} parent=1 // pred_check
      _
    $region39: #{apply.1} parent=1 // pred_check_branch
      %354 = sbr.rel (0) target = $region41
    $region40: #{apply.1} parent=1 // pred_region
      %355 = dma.done [#allocation4], 32
    $region41: #{apply.1} parent=1 // pred_fallthru
      _
    %356 = vsyncpa [#allocation3], 1
    %357 = vsyncpa [#allocation6], 1
    %358 = vsyncpa [#allocation4], 1

</llo_original>
